<compile_context>
chip_gen: v6e
topology: v6e:2x2x1
jax: 0.10.0
libtpu: 0.0.40
codegen_flags: <defaults>
</compile_context>

<pallas_src>
import functools

import jax
import jax.numpy as jnp
from jax.experimental import pallas as pl
from jax.experimental.pallas import tpu as pltpu

EPS = 1e-6
P_TRID = 0.5
ALPHA = 0.1
LANES = 128


def _trid_kernel(x_ref, p_ref, o_ref):
    """One row-tile of (N*C, H*W): instance stats + random style mix."""
    x = x_ref[...]                                     # (rows, HW), native dtype
    hw = x.shape[-1]

    # ---- pass 1: shifted one-pass moments (f32 accumulation) -------------
    # Per-row offset c = x[:, 0] keeps |x - c| ~ O(sigma), so the
    # sum-of-squares formula stays numerically safe while sum(d) and
    # sum(d*d) come out of the same traversal of the tile.  `d` is the only
    # full-tile temp and is reused for the output store below.
    c = x[:, 0:1]                                      # (rows, 1), native dtype
    d = x - c                                          # (rows, HW), native dtype
    s1 = jnp.sum(d, axis=-1, keepdims=True, dtype=jnp.float32)
    s2 = jnp.sum(jnp.square(d), axis=-1, keepdims=True, dtype=jnp.float32)

    cf = c.astype(jnp.float32)
    mu = cf + s1 * (1.0 / hw)                          # spatial mean
    # unbiased variance (torch.var default, ddof=1)
    var = jnp.maximum(s2 - s1 * s1 * (1.0 / hw), 0.0) * (1.0 / (hw - 1))

    # ---- per-row scalars only: rsqrt on the EUP slot instead of sqrt+div --
    inv_sig = jax.lax.rsqrt(var + EPS)                 # 1 / sig
    sig = (var + EPS) * inv_sig                        # == sqrt(var + eps)

    # packed random style statistics: (rows, 3) = [mu_random, sig_random, bern]
    p = p_ref[...].astype(jnp.float32)
    mu_r, sig_r, b = p[:, 0:1], p[:, 1:2], p[:, 2:3]
    mu_mix = mu_r * b + mu * (1.0 - b)
    sig_mix = sig_r * b + sig * (1.0 - b)

    # fold normalize + mix into a per-row scale/shift on the shifted values:
    #   out = (x - mu) / sig * sig_mix + mu_mix = d * a + (mu_mix - (mu - c) * a)
    a = sig_mix * inv_sig
    shift = mu_mix - (mu - cf) * a

    # ---- pass 2: single read of d, single store of out --------------------
    o_ref[...] = (d * a.astype(x.dtype) + shift.astype(x.dtype)).astype(o_ref.dtype)


@functools.lru_cache(maxsize=1)
def _is_small_vmem_tpu():
    """True for v7x-class chips (≈64 MiB VMEM per TensorCore, 2 TCs/chip)."""
    vmem = None
    try:
        info = pltpu.get_tpu_info()
        vmem = getattr(info, "vmem_capacity_bytes", None)
    except Exception:
        vmem = None
    if vmem is not None:
        return int(vmem) < (100 << 20)
    try:
        kind = jax.devices()[0].device_kind.lower()
    except Exception:
        kind = ""
    return "v7" in kind


def _round_up(a, b):
    return -(-a // b) * b


def _choose_row_tile(nc, hw, itemsize, small_vmem):
    """Pick a sublane-aligned row tile sized per TPU generation.

    v7x-class (64 MiB VMEM, 2 TensorCores): ~2 MiB x blocks and >=8 grid steps
    so each core gets >=4 pipelined blocks.  v5e/v6e (128 MiB VMEM, 1 TC):
    8-16 MiB x blocks to amortize the ~0.35 us/step overhead, with >=2 steps
    when the input is big enough.  Non-dividing tiles are fine: the ragged
    last block is handled by Pallas edge masking (rows are independent).
    """
    packing = max(8, 32 // itemsize)                 # f32 -> 8, bf16 -> 16, int8 -> 32
    row_bytes = max(1, hw * itemsize)
    if small_vmem:
        target_block = 2 << 20
        min_steps = 8
    else:
        target_block = 12 << 20
        min_steps = 2

    budget_rows = max(packing, (target_block // row_bytes) // packing * packing)
    rt = min(budget_rows, _round_up(nc, packing))

    # Shrink (keeping sublane alignment) so we get >= min_steps grid steps,
    # when nc is large enough to allow it.
    cap = (nc // min_steps) // packing * packing
    if cap >= packing:
        rt = min(rt, cap)

    if rt >= nc:
        rt = nc                                      # single full-extent block
    return rt


def trid_apply(x, mu_random, var_random, bernoulli):
    """Hot path of TriD.forward (the branch where the style mix is applied)."""
    N, C, H, W = x.shape
    NC, HW = N * C, H * W
    itemsize = jnp.dtype(x.dtype).itemsize

    small_vmem = _is_small_vmem_tpu()
    row_tile = _choose_row_tile(NC, HW, itemsize, small_vmem)
    grid = pl.cdiv(NC, row_tile)                     # ragged last tile allowed

    x2 = x.reshape(NC, HW)
    params = jnp.concatenate(
        [mu_random.reshape(NC, 1),
         var_random.reshape(NC, 1),
         bernoulli.reshape(NC, 1)],
        axis=1).astype(jnp.float32)                  # (NC, 3): one DMA per step

    # VMEM budget: double-buffered x in + out blocks plus the lane-padded
    # (row_tile, 3) param block.  Raised above the per-generation default
    # scoped limit, capped safely below physical VMEM (64 MiB on v7x-class,
    # 128 MiB otherwise).
    blk_x = row_tile * HW * itemsize
    blk_p = row_tile * LANES * 4
    need = 4 * blk_x + 2 * blk_p + (4 << 20)
    if small_vmem:
        vmem_limit = int(min(48 << 20, max(16 << 20, need)))
    else:
        vmem_limit = int(min(96 << 20, max(32 << 20, need)))

    out = pl.pallas_call(
        _trid_kernel,
        out_shape=jax.ShapeDtypeStruct((NC, HW), x.dtype),
        grid_spec=pltpu.PrefetchScalarGridSpec(
            num_scalar_prefetch=0,
            grid=(grid,),
            in_specs=[
                # On v5e, pipeline_mode=pl.Buffered(3) on this spec is a
                # further option to hide DMA-issue jitter; default double
                # buffering is kept here for portability.
                pl.BlockSpec((row_tile, HW), lambda i: (i, 0)),
                pl.BlockSpec((row_tile, 3), lambda i: (i, 0)),
            ],
            out_specs=pl.BlockSpec((row_tile, HW), lambda i: (i, 0)),
        ),
        compiler_params=pltpu.CompilerParams(
            dimension_semantics=("parallel",),
            vmem_limit_bytes=vmem_limit,
        ),
    )(x2, params)

    return out.reshape(N, C, H, W)


def trid_forward(x, key, p=P_TRID, alpha=ALPHA):
    """Full TriD.forward semantics: random gate + random style statistics.

    The gate is a traced lax.cond (no device->host sync), so the whole forward
    is jittable.  Randomness (uniforms, Beta, Bernoulli) is sampled in plain
    JAX (glue); the stats/normalize/mix hot path runs in the Pallas kernel.
    """
    k_gate, k_mu, k_var, k_beta, k_bern = jax.random.split(key, 5)
    N, C, _, _ = x.shape
    mu_random = jax.random.uniform(k_mu, (N, C, 1, 1), dtype=jnp.float32)
    var_random = jax.random.uniform(k_var, (N, C, 1, 1), dtype=jnp.float32)
    lmda = jax.random.beta(k_beta, alpha, alpha, (N, C, 1, 1)).astype(jnp.float32)
    bernoulli = jax.random.bernoulli(k_bern, lmda).astype(jnp.float32)
    apply_mix = jax.random.uniform(k_gate) <= p
    return jax.lax.cond(
        apply_mix,
        lambda xx: trid_apply(xx, mu_random, var_random, bernoulli),
        lambda xx: xx,
        x,
    )


def _trid_reference(x, mu_random, var_random, bernoulli, eps=EPS):
    """Pure-JAX reference mirroring the PyTorch code (unbiased variance)."""
    mu = jnp.mean(x, axis=(2, 3), keepdims=True)
    var = jnp.var(x, axis=(2, 3), keepdims=True, ddof=1)
    sig = jnp.sqrt(var + eps)
    x_normed = (x - mu) / sig
    b = bernoulli
    mu_mix = mu_random * b + mu * (1.0 - b)
    sig_mix = var_random * b + sig * (1.0 - b)   # note: matches PyTorch (uses var_random as a std)
    return x_normed * sig_mix + mu_mix


def _make_inputs(key, N, C, H, W):
    k_x, k_mu, k_var, k_beta, k_bern = jax.random.split(key, 5)
    x = jax.random.normal(k_x, (N, C, H, W), dtype=jnp.float32) * 2.0 + 0.5
    mu_random = jax.random.uniform(k_mu, (N, C, 1, 1), dtype=jnp.float32)
    var_random = jax.random.uniform(k_var, (N, C, 1, 1), dtype=jnp.float32)
    lmda = jax.random.beta(k_beta, ALPHA, ALPHA, (N, C, 1, 1)).astype(jnp.float32)
    bernoulli = jax.random.bernoulli(k_bern, lmda).astype(jnp.float32)
    return x, mu_random, var_random, bernoulli


if __name__ == "__main__":
    key = jax.random.PRNGKey(0)
    k_a, k_b, k_fwd = jax.random.split(key, 3)

    # Case 1: module-sized input (single block).
    x, mu_r, var_r, bern = _make_inputs(k_a, 2, 4, 16, 16)
    out = jax.block_until_ready(trid_apply(x, mu_r, var_r, bern))
    ref = _trid_reference(x, mu_r, var_r, bern)
    assert out.shape == x.shape and out.dtype == x.dtype
    assert jnp.allclose(out, ref, atol=1e-4, rtol=1e-4), "mismatch vs reference (case 1)"

    # Case 2: row count that does not divide the chosen tile -> exercises the
    # ragged last block (no padded copy of x).
    x2, mu_r2, var_r2, bern2 = _make_inputs(k_b, 4, 17, 16, 16)
    out2 = jax.block_until_ready(trid_apply(x2, mu_r2, var_r2, bern2))
    ref2 = _trid_reference(x2, mu_r2, var_r2, bern2)
    assert jnp.allclose(out2, ref2, atol=1e-4, rtol=1e-4), "mismatch vs reference (case 2)"

    # Exercise the full (jittable) forward once as well: gate via lax.cond.
    _ = jax.block_until_ready(jax.jit(trid_forward)(x, k_fwd))

    print("KERNEL_OK")
</pallas_src>

<mosaic_0001>
module attributes {stable_mosaic.version = 11 : i64} {
  func.func @_trid_kernel(%arg0: i32, %arg1: memref<8x256xf32, #tpu.memory_space<vmem>>, %arg2: memref<8x3xf32, #tpu.memory_space<vmem>>, %arg3: memref<8x256xf32, #tpu.memory_space<vmem>>) attributes {dimension_semantics = [#tpu.dimension_semantics<parallel>], iteration_bounds = array<i64: 1>, scalar_prefetch = 0 : i64, scratch_operands = 0 : i64, tpu.core_type = #tpu.core_type<tc>, window_params = [{transform_indices = @transform_0, window_bounds = array<i64: 8, 256>}, {transform_indices = @transform_1, window_bounds = array<i64: 8, 3>}, {transform_indices = @transform_2, window_bounds = array<i64: 8, 256>}]} {
    %c0 = arith.constant 0 : index
    %c0_0 = arith.constant 0 : index
    %0 = vector.load %arg1[%c0, %c0_0] : memref<8x256xf32, #tpu.memory_space<vmem>>, vector<8x256xf32>
    %1 = vector.extract_strided_slice %0 {offsets = [0, 0], sizes = [8, 1], strides = [1, 1]} : vector<8x256xf32> to vector<8x1xf32>
    %2 = vector.broadcast %1 : vector<8x1xf32> to vector<8x256xf32>
    %3 = arith.subf %0, %2 : vector<8x256xf32>
    %cst = arith.constant dense<0.000000e+00> : vector<8xf32>
    %4 = vector.multi_reduction <add>, %3, %cst [1] : vector<8x256xf32> to vector<8xf32>
    %5 = vector.shape_cast %4 : vector<8xf32> to vector<8x1xf32>
    %6 = arith.mulf %3, %3 : vector<8x256xf32>
    %cst_1 = arith.constant dense<0.000000e+00> : vector<8xf32>
    %7 = vector.multi_reduction <add>, %6, %cst_1 [1] : vector<8x256xf32> to vector<8xf32>
    %8 = vector.shape_cast %7 : vector<8xf32> to vector<8x1xf32>
    %cst_2 = arith.constant 3.906250e-03 : f32
    %9 = vector.broadcast %cst_2 : f32 to vector<8x1xf32>
    %10 = arith.mulf %5, %9 : vector<8x1xf32>
    %11 = arith.addf %1, %10 : vector<8x1xf32>
    %12 = arith.mulf %5, %5 : vector<8x1xf32>
    %cst_3 = arith.constant 3.906250e-03 : f32
    %13 = vector.broadcast %cst_3 : f32 to vector<8x1xf32>
    %14 = arith.mulf %12, %13 : vector<8x1xf32>
    %15 = arith.subf %8, %14 : vector<8x1xf32>
    %cst_4 = arith.constant 0.000000e+00 : f32
    %16 = vector.broadcast %cst_4 : f32 to vector<8x1xf32>
    %17 = arith.maximumf %15, %16 : vector<8x1xf32>
    %cst_5 = arith.constant 0.00392156886 : f32
    %18 = vector.broadcast %cst_5 : f32 to vector<8x1xf32>
    %19 = arith.mulf %17, %18 : vector<8x1xf32>
    %cst_6 = arith.constant 9.99999997E-7 : f32
    %20 = vector.broadcast %cst_6 : f32 to vector<8x1xf32>
    %21 = arith.addf %19, %20 : vector<8x1xf32>
    %22 = math.rsqrt %21 : vector<8x1xf32>
    %cst_7 = arith.constant 9.99999997E-7 : f32
    %23 = vector.broadcast %cst_7 : f32 to vector<8x1xf32>
    %24 = arith.addf %19, %23 : vector<8x1xf32>
    %25 = arith.mulf %24, %22 : vector<8x1xf32>
    %c0_8 = arith.constant 0 : index
    %c0_9 = arith.constant 0 : index
    %26 = vector.load %arg2[%c0_8, %c0_9] : memref<8x3xf32, #tpu.memory_space<vmem>>, vector<8x3xf32>
    %27 = vector.extract_strided_slice %26 {offsets = [0, 0], sizes = [8, 1], strides = [1, 1]} : vector<8x3xf32> to vector<8x1xf32>
    %28 = vector.extract_strided_slice %26 {offsets = [0, 1], sizes = [8, 1], strides = [1, 1]} : vector<8x3xf32> to vector<8x1xf32>
    %29 = vector.extract_strided_slice %26 {offsets = [0, 2], sizes = [8, 1], strides = [1, 1]} : vector<8x3xf32> to vector<8x1xf32>
    %30 = arith.mulf %27, %29 : vector<8x1xf32>
    %cst_10 = arith.constant 1.000000e+00 : f32
    %31 = vector.broadcast %cst_10 : f32 to vector<8x1xf32>
    %32 = arith.subf %31, %29 : vector<8x1xf32>
    %33 = arith.mulf %11, %32 : vector<8x1xf32>
    %34 = arith.addf %30, %33 : vector<8x1xf32>
    %35 = arith.mulf %28, %29 : vector<8x1xf32>
    %cst_11 = arith.constant 1.000000e+00 : f32
    %36 = vector.broadcast %cst_11 : f32 to vector<8x1xf32>
    %37 = arith.subf %36, %29 : vector<8x1xf32>
    %38 = arith.mulf %25, %37 : vector<8x1xf32>
    %39 = arith.addf %35, %38 : vector<8x1xf32>
    %40 = arith.mulf %39, %22 : vector<8x1xf32>
    %41 = arith.subf %11, %1 : vector<8x1xf32>
    %42 = arith.mulf %41, %40 : vector<8x1xf32>
    %43 = arith.subf %34, %42 : vector<8x1xf32>
    %44 = vector.broadcast %40 : vector<8x1xf32> to vector<8x256xf32>
    %45 = arith.mulf %3, %44 : vector<8x256xf32>
    %46 = vector.broadcast %43 : vector<8x1xf32> to vector<8x256xf32>
    %47 = arith.addf %45, %46 : vector<8x256xf32>
    %c0_12 = arith.constant 0 : index
    %c0_13 = arith.constant 0 : index
    %48 = vector.load %arg3[%c0_12, %c0_13] : memref<8x256xf32, #tpu.memory_space<vmem>>, vector<8x256xf32>
    tpu.vector_store %arg3[%c0_12, %c0_13], %47 {strides = array<i32>} : memref<8x256xf32, #tpu.memory_space<vmem>>, vector<8x256xf32>,
    return
  }
  func.func @transform_0(%arg0: i32) -> (i32, i32) {
    %c0_i32 = arith.constant 0 : i32
    %c0_i32_0 = arith.constant 0 : i32
    return %arg0, %c0_i32 : i32, i32
  }
  func.func @transform_1(%arg0: i32) -> (i32, i32) {
    %c0_i32 = arith.constant 0 : i32
    %c0_i32_0 = arith.constant 0 : i32
    return %arg0, %c0_i32 : i32, i32
  }
  func.func @transform_2(%arg0: i32) -> (i32, i32) {
    %c0_i32 = arith.constant 0 : i32
    %c0_i32_0 = arith.constant 0 : i32
    return %arg0, %c0_i32 : i32, i32
  }
}

</mosaic_0001>

<llo_original>
// kernel: tpu_custom_call.1
$region0: #{tpu_custom_call.1}
  #allocation0 [shape = 'u32[]', space=smem, size = 0x4, offset = 0x4, fixed_abs, tag = 'smem constant byte address 0x4 - core index']
  #allocation1 [shape = 'u32[144,128]{1,0:T(1,128)}', space=vmem, size = 0x12000, scoped, tag = 'internal scratch']
  %s0 = inlined_call_operand.hbm [shape: f32[8,256], index: 0, kind: input, shape index: {}]
  %s1 = inlined_call_operand.vmem [shape: f32[8,3], index: 1, kind: input, shape index: {}]
  %s2 = inlined_call_operand.hbm [shape: f32[8,256], index: 2, kind: output, shape index: {}]
  %s3 = sld [smem:[#allocation0]]
  $region22: #{tpu_custom_call.1} parent=0
    _
  %s5 = ssub.s32 1, %s3
  %s6 = scalar_select 0, %s5, %s3
  $region1: #{tpu_custom_call.1} parent=0
    #allocation2 [shape = 'u8[8192]{0}', space=vmem, size = 0x2000, scoped, tag = 'input window, operand 0, single buffered']
    #allocation3 [shape = 's32[1]{0}', space=sflag, size = 0x4, scoped, tag = 'scoped memory for tpu_custom_call.1']
    #allocation4 [shape = 's32[1]{0}', space=sflag, size = 0x4, scoped, tag = 'scoped memory for tpu_custom_call.1']
    #allocation5 [shape = 'u8[8192]{0}', space=vmem, size = 0x2000, scoped, tag = 'output window, operand 0, single buffered']
    %7 = vsyncpa [#allocation3], 0
    %8 = vsyncpa [#allocation4], 0
    // Predicated region
    $region2: #{tpu_custom_call.1} parent=1 // pred_check
      _
    $region3: #{tpu_custom_call.1} parent=1 // pred_check_branch
      %10 = sbr.rel (0) target = $region5
    $region4: #{tpu_custom_call.1} parent=1 // pred_region
      %s12 = ssub.s32 256, 256
      %13 = vsyncadd [#allocation3], %s12
      %s15 = sshll.u32 [#allocation2], 4
      %s16 = int_to_ptr.vmem [resolvable:$true] %s15
      %18 = dma.hbm_to_vmem [thread:$0]  %s0, 256, %s16, [#allocation3]
    $region5: #{tpu_custom_call.1} parent=1 // pred_fallthru
      _
    // Predicated region
    $region6: #{tpu_custom_call.1} parent=1 // pred_check
      _
    $region7: #{tpu_custom_call.1} parent=1 // pred_check_branch
      %20 = sbr.rel (0) target = $region9
    $region8: #{tpu_custom_call.1} parent=1 // pred_region
      _
    $region9: #{tpu_custom_call.1} parent=1 // pred_fallthru
      _
    // Predicated region
    $region10: #{tpu_custom_call.1} parent=1 // pred_check
      _
    $region11: #{tpu_custom_call.1} parent=1 // pred_check_branch
      %22 = sbr.rel (0) target = $region13
    $region12: #{tpu_custom_call.1} parent=1 // pred_region
      %23 = dma.done [#allocation3], 256
    $region13: #{tpu_custom_call.1} parent=1 // pred_fallthru
      _
    %v24 = vld [vmem:[#allocation2] sm:$0xff]
    %v25 = vld [vmem:[#allocation2 + $0x8] sm:$0xff]
    %27 = vset.pattern.permute.xlu0 0
    %28 = vperm.xlu0 %27, %v24
    %v29 = vpop.permute.xlu0 %28
    %v31 = vsub.f32 %v24, %v29
    %v32 = vsub.f32 %v25, %v29
    %v33 = vadd.f32 %v31, %v32
    %34 = vadd.xlane.f32.xlu0 %v33
    %v35 = vpop.xlane.xlu0 %34
    %v36 = vmul.f32 %v31, %v31
    %v37 = vmul.f32 %v32, %v32
    %v38 = vadd.f32 %v36, %v37
    %39 = vadd.xlane.f32.xlu0 %v38
    %v40 = vpop.xlane.xlu0 %39
    %v41 = vmul.f32 %v35, 0.00390625
    %v42 = vadd.f32 %v24, %v41
    %v43 = vmul.f32 %v35, %v35
    %v44 = vmul.f32 %v43, 0.00390625
    %v45 = vsub.f32 %v40, %v44
    %v46 = vmax.f32 %v45, 0.0
    %v47 = vmul.f32 %v46, 0.003921569
    %v48 = vadd.f32 %v47, 1e-06
    %v49 = vrsqrt.pop %v48
    %v50 = vmul.f32 %v48, %v49
    %v51 = vld [vmem:[%s1] sm:$0xff]
    %53 = vrot.lane.b32.xlu0 %v51, 126
    %v54 = vpop.permute.xlu0 %53
    %v56 = vmul.f32 %v51, %v54
    %v57 = vsub.f32 1.0, %v51
    %59 = vrot.lane.b32.xlu0 %v57, 126
    %v60 = vpop.permute.xlu0 %59
    %v62 = vmul.f32 %v42, %v60
    %v63 = vadd.f32 %v56, %v62
    %64 = vrot.lane.b32.xlu0 %v51, 127
    %v65 = vpop.permute.xlu0 %64
    %v67 = vmul.f32 %v51, %v65
    %v68 = vmul.f32 %v50, %v57
    %70 = vrot.lane.b32.xlu0 %v68, 127
    %v71 = vpop.permute.xlu0 %70
    %v73 = vadd.f32 %v67, %v71
    %v74 = vmul.f32 %v73, %v49
    %v75 = vsub.f32 %v42, %v24
    %77 = vrot.lane.b32.xlu0 %v74, 127
    %v78 = vpop.permute.xlu0 %77
    %v80 = vmul.f32 %v75, %v78
    %v81 = vsub.f32 %v63, %v80
    %82 = vset.pattern.permute.xlu0 1
    %83 = vperm.xlu0 %82, %v74
    %v84 = vpop.permute.xlu0 %83
    %v86 = vmul.f32 %v31, %v84
    %v87 = vmul.f32 %v32, %v84
    %89 = vset.pattern.permute.xlu0 0
    %90 = vperm.xlu0 %89, %v81
    %v91 = vpop.permute.xlu0 %90
    %v93 = vadd.f32 %v86, %v91
    %v94 = vadd.f32 %v87, %v91
    %95 = vst [vmem:[#allocation5] sm:$0xff] %v93
    %96 = vst [vmem:[#allocation5 + $0x8] sm:$0xff] %v94
    // Predicated region
    $region14: #{tpu_custom_call.1} parent=1 // pred_check
      _
    $region15: #{tpu_custom_call.1} parent=1 // pred_check_branch
      %98 = sbr.rel (0) target = $region17
    $region16: #{tpu_custom_call.1} parent=1 // pred_region
      %s100 = ssub.s32 256, 256
      %101 = vsyncadd [#allocation4], %s100
      %s103 = sshll.u32 [#allocation5], 4
      %s104 = int_to_ptr.vmem [resolvable:$true] %s103
      %106 = dma.vmem_to_hbm [thread:$0]  %s104, 256, %s2, [#allocation4]
    $region17: #{tpu_custom_call.1} parent=1 // pred_fallthru
      _
    // Predicated region
    $region18: #{tpu_custom_call.1} parent=1 // pred_check
      _
    $region19: #{tpu_custom_call.1} parent=1 // pred_check_branch
      %108 = sbr.rel (0) target = $region21
    $region20: #{tpu_custom_call.1} parent=1 // pred_region
      %109 = dma.done [#allocation4], 256
    $region21: #{tpu_custom_call.1} parent=1 // pred_fallthru
      _
    %110 = vsyncpa [#allocation3], 1
    %111 = vsyncpa [#allocation4], 1

</llo_original>
